<compile_context>
chip_gen: v6e
topology: v6e:2x2x1
jax: 0.10.0
libtpu: 0.0.40
codegen_flags: <defaults>
</compile_context>

<pallas_src>
import jax
import jax.numpy as jnp
from jax.experimental import pallas as pl
from jax.experimental.pallas import tpu as pltpu

EPS = 1e-5
LANE = 128      # lane width; also the padded output width
SUBLANE = 8


def _round_up(n, m):
    return (n + m - 1) // m * m


def _make_kernel(n_rows, tile_n, d, h, o_pad):
    """Build the 3-phase LinNN kernel for a fixed (true) batch size n_rows."""
    inv_n = 1.0 / float(n_rows)

    def kernel(x_ref, w1_ref, vec_ref, o_ref,
               stat0_ref, stat1_ref, w1e_ref, b1e_ref):
        p = pl.program_id(0)          # phase: 0 = x stats, 1 = h stats, 2 = output
        i = pl.program_id(1)          # batch tile index
        x = x_ref[...]                # (tile_n, d); padded rows are zero

        # ---------------- phase 0: one-pass bn0 stats ----------------
        @pl.when(p == 0)
        def _phase0():
            @pl.when(i == 0)
            def _init0():
                stat0_ref[...] = jnp.zeros_like(stat0_ref)
            # zero-padded rows contribute nothing to sum / sum-of-squares
            stat0_ref[0:1, :] = stat0_ref[0:1, :] + jnp.sum(x, axis=0, keepdims=True)
            stat0_ref[1:2, :] = stat0_ref[1:2, :] + jnp.sum(x * x, axis=0, keepdims=True)

        # -------- phase 1: fold bn0 into fc1, one-pass bn1 stats --------
        @pl.when(p == 1)
        def _phase1():
            @pl.when(i == 0)
            def _fold():
                mean0 = stat0_ref[0:1, :] * inv_n                              # (1, d)
                var0 = jnp.maximum(stat0_ref[1:2, :] * inv_n - mean0 * mean0, 0.0)
                g0 = vec_ref[0:1, 0:d]
                b0 = vec_ref[1:2, 0:d]
                bb1 = vec_ref[2:3, 0:h]
                s0 = g0 * jax.lax.rsqrt(var0 + EPS)                            # (1, d)
                t0 = b0 - mean0 * s0                                           # (1, d)
                w1 = w1_ref[...]                                               # (h, d) torch layout
                w1e_ref[...] = w1 * s0                                         # bn0 scale folded into weights
                # bias_eff = bb1 + t0 @ W1  (W1 = w1.T); contract on d
                b1e_ref[...] = bb1 + jax.lax.dot_general(
                    t0, w1, (((1,), (1,)), ((), ())),
                    preferred_element_type=jnp.float32)                        # (1, h)
                stat1_ref[...] = jnp.zeros_like(stat1_ref)

            hmat = jax.lax.dot_general(
                x, w1e_ref[...], (((1,), (1,)), ((), ())),
                preferred_element_type=jnp.float32) + b1e_ref[...]             # (tile_n, h)
            # mask padded rows (their h equals bias_eff, not zero)
            rows = jax.lax.broadcasted_iota(jnp.int32, (tile_n, h), 0) + i * tile_n
            hmat = jnp.where(rows < n_rows, hmat, 0.0)
            stat1_ref[0:1, :] = stat1_ref[0:1, :] + jnp.sum(hmat, axis=0, keepdims=True)
            stat1_ref[1:2, :] = stat1_ref[1:2, :] + jnp.sum(hmat * hmat, axis=0, keepdims=True)

        # ------------- phase 2: bn1 affine + ReLU + fc3 -------------
        @pl.when(p == 2)
        def _phase2():
            hmat = jax.lax.dot_general(
                x, w1e_ref[...], (((1,), (1,)), ((), ())),
                preferred_element_type=jnp.float32) + b1e_ref[...]             # (tile_n, h)
            mean1 = stat1_ref[0:1, :] * inv_n
            var1 = jnp.maximum(stat1_ref[1:2, :] * inv_n - mean1 * mean1, 0.0)
            g1 = vec_ref[3:4, 0:h]
            b1 = vec_ref[4:5, 0:h]
            s1 = g1 * jax.lax.rsqrt(var1 + EPS)
            t1 = b1 - mean1 * s1
            hh = jnp.maximum(hmat * s1 + t1, 0.0)                              # (tile_n, h)
            # fc3 (out_dim=1): VPU multiply + lane reduction instead of a
            # 1-column MXU matmul; write a lane-dense padded output.
            w3row = vec_ref[6:7, 0:h]                                          # (1, h)
            logits = jnp.sum(hh * w3row, axis=-1, keepdims=True)               # (tile_n, 1)
            o_ref[...] = jnp.broadcast_to(logits, (tile_n, o_pad)) + vec_ref[5:6, :]

    return kernel


def _pack_vectors(params, d, h, o_pad):
    """Pack g0, b0, bb1, g1, b1, bb3, w3 into one (8, o_pad) f32 slab."""
    vec = jnp.zeros((SUBLANE, o_pad), jnp.float32)
    vec = vec.at[0, :d].set(params["g0"].astype(jnp.float32))
    vec = vec.at[1, :d].set(params["b0"].astype(jnp.float32))
    vec = vec.at[2, :h].set(params["bb1"].astype(jnp.float32))
    vec = vec.at[3, :h].set(params["g1"].astype(jnp.float32))
    vec = vec.at[4, :h].set(params["b1"].astype(jnp.float32))
    # bb3 (scalar) replicated across all lanes so the padded output add is lane-wise
    vec = vec.at[5, :].set(jnp.broadcast_to(params["bb3"].astype(jnp.float32)[0], (o_pad,)))
    vec = vec.at[6, :h].set(params["w3"].astype(jnp.float32)[0])
    return vec


def linnn_forward(x, params, *, tile_rows=512):
    """x: (N, input_dim) float32. params use PyTorch layouts (weights: out x in)."""
    n, d = x.shape
    w1 = params["w1"].astype(jnp.float32)            # (hidden, input)
    h = w1.shape[0]
    o = params["w3"].shape[0]
    if d > LANE or h > LANE or o != 1:
        raise NotImplementedError("vector packing assumes input/hidden <= 128 and output_dim == 1")

    tn = min(_round_up(n, SUBLANE), _round_up(tile_rows, SUBLANE))
    n_pad = _round_up(n, tn)
    n_tiles = n_pad // tn
    x32 = x.astype(jnp.float32)
    x_pad = x32 if n_pad == n else jnp.pad(x32, ((0, n_pad - n), (0, 0)))
    vec = _pack_vectors(params, d, h, LANE)

    kernel = _make_kernel(n, tn, d, h, LANE)
    out_pad = pl.pallas_call(
        kernel,
        out_shape=jax.ShapeDtypeStruct((n_pad, LANE), jnp.float32),
        grid_spec=pltpu.PrefetchScalarGridSpec(
            num_scalar_prefetch=0,
            grid=(3, n_tiles),                                     # (phase, batch tile)
            in_specs=[
                pl.BlockSpec((tn, d), lambda p, i: (i, 0)),        # x tile
                pl.BlockSpec((h, d), lambda p, i: (0, 0)),         # fc1 weight, resident
                pl.BlockSpec((SUBLANE, LANE), lambda p, i: (0, 0)),  # packed param vectors
            ],
            out_specs=pl.BlockSpec((tn, LANE), lambda p, i: (i, 0)),
            scratch_shapes=[
                pltpu.VMEM((2, d), jnp.float32),   # sum(x), sum(x*x)
                pltpu.VMEM((2, h), jnp.float32),   # sum(h), sum(h*h)
                pltpu.VMEM((h, d), jnp.float32),   # W1_eff (bn0 folded into fc1)
                pltpu.VMEM((1, h), jnp.float32),   # bias_eff
            ],
        ),
        compiler_params=pltpu.CompilerParams(
            # phase axis and the per-tile stats reductions are sequential
            dimension_semantics=("arbitrary", "arbitrary"),
            vmem_limit_bytes=32 * 1024 * 1024,
        ),
    )(x_pad, w1, vec)
    return out_pad[:n, :o]


def init_params(key, input_dim, hidden_dim=64, output_dim=1):
    """Parameters in PyTorch layout. fc2/bn2 are unused in forward() -> omitted."""
    ks = jax.random.split(key, 8)
    lim1 = 1.0 / (input_dim ** 0.5)
    lim3 = 1.0 / (hidden_dim ** 0.5)
    return {
        # BatchNorm affine params (PyTorch default init is ones/zeros; randomized
        # slightly here so the test exercises the affine path).
        "g0": 1.0 + 0.1 * jax.random.normal(ks[0], (input_dim,), jnp.float32),
        "b0": 0.1 * jax.random.normal(ks[1], (input_dim,), jnp.float32),
        "g1": 1.0 + 0.1 * jax.random.normal(ks[2], (hidden_dim,), jnp.float32),
        "b1": 0.1 * jax.random.normal(ks[3], (hidden_dim,), jnp.float32),
        # fc1: (out_features, in_features)
        "w1": jax.random.uniform(ks[4], (hidden_dim, input_dim), jnp.float32, -lim1, lim1),
        "bb1": jax.random.uniform(ks[5], (hidden_dim,), jnp.float32, -lim1, lim1),
        # fc3
        "w3": jax.random.uniform(ks[6], (output_dim, hidden_dim), jnp.float32, -lim3, lim3),
        "bb3": jax.random.uniform(ks[7], (output_dim,), jnp.float32, -lim3, lim3),
    }


def reference_forward(x, p):
    """Pure-JAX reference (training-mode BatchNorm: batch stats, biased variance)."""
    hp = jax.lax.Precision.HIGHEST
    m0 = jnp.mean(x, axis=0, keepdims=True)
    v0 = jnp.mean((x - m0) ** 2, axis=0, keepdims=True)
    xh = (x - m0) / jnp.sqrt(v0 + EPS) * p["g0"] + p["b0"]
    hmat = jnp.dot(xh, p["w1"].T, precision=hp) + p["bb1"]
    m1 = jnp.mean(hmat, axis=0, keepdims=True)
    v1 = jnp.mean((hmat - m1) ** 2, axis=0, keepdims=True)
    hh = jnp.maximum((hmat - m1) / jnp.sqrt(v1 + EPS) * p["g1"] + p["b1"], 0.0)
    return jnp.dot(hh, p["w3"].T, precision=hp) + p["bb3"]


if __name__ == "__main__":
    key = jax.random.PRNGKey(0)
    kx, kp = jax.random.split(key)

    N, INPUT_DIM, HIDDEN_DIM, OUTPUT_DIM = 8, 16, 64, 1
    x = jax.random.normal(kx, (N, INPUT_DIM), jnp.float32)
    params = init_params(kp, INPUT_DIM, HIDDEN_DIM, OUTPUT_DIM)

    out = jax.block_until_ready(linnn_forward(x, params))
    ref = reference_forward(x, params)

    assert out.shape == (N, OUTPUT_DIM), out.shape
    assert jnp.allclose(out, ref, atol=2e-4, rtol=2e-4), float(jnp.max(jnp.abs(out - ref)))
    print("KERNEL_OK")
</pallas_src>

<mosaic_0001>
module attributes {stable_mosaic.version = 11 : i64} {
  func.func @kernel(%arg0: i32, %arg1: i32, %arg2: memref<8x16xf32, #tpu.memory_space<vmem>>, %arg3: memref<64x16xf32, #tpu.memory_space<vmem>>, %arg4: memref<8x128xf32, #tpu.memory_space<vmem>>, %arg5: memref<8x128xf32, #tpu.memory_space<vmem>>, %arg6: memref<2x16xf32, #tpu.memory_space<vmem>>, %arg7: memref<2x64xf32, #tpu.memory_space<vmem>>, %arg8: memref<64x16xf32, #tpu.memory_space<vmem>>, %arg9: memref<1x64xf32, #tpu.memory_space<vmem>>) attributes {dimension_semantics = [#tpu.dimension_semantics<arbitrary>, #tpu.dimension_semantics<arbitrary>], iteration_bounds = array<i64: 3, 1>, scalar_prefetch = 0 : i64, scratch_operands = 4 : i64, tpu.core_type = #tpu.core_type<tc>, window_params = [{transform_indices = @transform_0, window_bounds = array<i64: 8, 16>}, {pipeline_mode = #tpu.pipeline_mode<synchronous>, transform_indices = @transform_1, window_bounds = array<i64: 64, 16>}, {pipeline_mode = #tpu.pipeline_mode<synchronous>, transform_indices = @transform_2, window_bounds = array<i64: 8, 128>}, {transform_indices = @transform_3, window_bounds = array<i64: 8, 128>}]} {
    %c0 = arith.constant 0 : index
    %c0_0 = arith.constant 0 : index
    %0 = vector.load %arg2[%c0, %c0_0] : memref<8x16xf32, #tpu.memory_space<vmem>>, vector<8x16xf32>
    %c0_i32 = arith.constant 0 : i32
    %1 = arith.cmpi eq, %arg0, %c0_i32 : i32
    %2 = arith.extui %1 : i1 to i32
    %c0_i32_1 = arith.constant 0 : i32
    %3 = arith.cmpi ne, %2, %c0_i32_1 : i32
    scf.if %3 {
      %c0_i32_4 = arith.constant 0 : i32
      %10 = arith.cmpi eq, %arg1, %c0_i32_4 : i32
      %11 = arith.extui %10 : i1 to i32
      %c0_i32_5 = arith.constant 0 : i32
      %12 = arith.cmpi ne, %11, %c0_i32_5 : i32
      scf.if %12 {
        %cst_14 = arith.constant 0.000000e+00 : f32
        %24 = vector.broadcast %cst_14 : f32 to vector<2x16xf32>
        %c0_15 = arith.constant 0 : index
        %c0_16 = arith.constant 0 : index
        %25 = vector.load %arg6[%c0_15, %c0_16] : memref<2x16xf32, #tpu.memory_space<vmem>>, vector<2x16xf32>
        tpu.vector_store %arg6[%c0_15, %c0_16], %24 {strides = array<i32>} : memref<2x16xf32, #tpu.memory_space<vmem>>, vector<2x16xf32>,
      } else {
      }
      %c0_6 = arith.constant 0 : index
      %c0_7 = arith.constant 0 : index
      %13 = vector.load %arg6[%c0_6, %c0_7] : memref<2x16xf32, #tpu.memory_space<vmem>>, vector<1x16xf32>
      %cst = arith.constant dense<0.000000e+00> : vector<16xf32>
      %14 = vector.multi_reduction <add>, %0, %cst [0] : vector<8x16xf32> to vector<16xf32>
      %15 = vector.shape_cast %14 : vector<16xf32> to vector<1x16xf32>
      %16 = arith.addf %13, %15 : vector<1x16xf32>
      %c0_8 = arith.constant 0 : index
      %c0_9 = arith.constant 0 : index
      %17 = vector.load %arg6[%c0_8, %c0_9] : memref<2x16xf32, #tpu.memory_space<vmem>>, vector<1x16xf32>
      tpu.vector_store %arg6[%c0_8, %c0_9], %16 {strides = array<i32>} : memref<2x16xf32, #tpu.memory_space<vmem>>, vector<1x16xf32>,
      %c1 = arith.constant 1 : index
      %c0_10 = arith.constant 0 : index
      %18 = vector.load %arg6[%c1, %c0_10] : memref<2x16xf32, #tpu.memory_space<vmem>>, vector<1x16xf32>
      %19 = arith.mulf %0, %0 : vector<8x16xf32>
      %cst_11 = arith.constant dense<0.000000e+00> : vector<16xf32>
      %20 = vector.multi_reduction <add>, %19, %cst_11 [0] : vector<8x16xf32> to vector<16xf32>
      %21 = vector.shape_cast %20 : vector<16xf32> to vector<1x16xf32>
      %22 = arith.addf %18, %21 : vector<1x16xf32>
      %c1_12 = arith.constant 1 : index
      %c0_13 = arith.constant 0 : index
      %23 = vector.load %arg6[%c1_12, %c0_13] : memref<2x16xf32, #tpu.memory_space<vmem>>, vector<1x16xf32>
      tpu.vector_store %arg6[%c1_12, %c0_13], %22 {strides = array<i32>} : memref<2x16xf32, #tpu.memory_space<vmem>>, vector<1x16xf32>,
    } else {
    }
    %c1_i32 = arith.constant 1 : i32
    %4 = arith.cmpi eq, %arg0, %c1_i32 : i32
    %5 = arith.extui %4 : i1 to i32
    %c0_i32_2 = arith.constant 0 : i32
    %6 = arith.cmpi ne, %5, %c0_i32_2 : i32
    scf.if %6 {
      %c0_i32_4 = arith.constant 0 : i32
      %10 = arith.cmpi eq, %arg1, %c0_i32_4 : i32
      %11 = arith.extui %10 : i1 to i32
      %c0_i32_5 = arith.constant 0 : i32
      %12 = arith.cmpi ne, %11, %c0_i32_5 : i32
      scf.if %12 {
        %c0_21 = arith.constant 0 : index
        %c0_22 = arith.constant 0 : index
        %37 = vector.load %arg6[%c0_21, %c0_22] : memref<2x16xf32, #tpu.memory_space<vmem>>, vector<1x16xf32>
        %cst_23 = arith.constant 1.250000e-01 : f32
        %38 = vector.broadcast %cst_23 : f32 to vector<1x16xf32>
        %39 = arith.mulf %37, %38 : vector<1x16xf32>
        %c1_24 = arith.constant 1 : index
        %c0_25 = arith.constant 0 : index
        %40 = vector.load %arg6[%c1_24, %c0_25] : memref<2x16xf32, #tpu.memory_space<vmem>>, vector<1x16xf32>
        %cst_26 = arith.constant 1.250000e-01 : f32
        %41 = vector.broadcast %cst_26 : f32 to vector<1x16xf32>
        %42 = arith.mulf %40, %41 : vector<1x16xf32>
        %43 = arith.mulf %39, %39 : vector<1x16xf32>
        %44 = arith.subf %42, %43 : vector<1x16xf32>
        %cst_27 = arith.constant 0.000000e+00 : f32
        %45 = vector.broadcast %cst_27 : f32 to vector<1x16xf32>
        %46 = arith.maximumf %44, %45 : vector<1x16xf32>
        %c0_28 = arith.constant 0 : index
        %c0_29 = arith.constant 0 : index
        %47 = vector.load %arg4[%c0_28, %c0_29] : memref<8x128xf32, #tpu.memory_space<vmem>>, vector<1x16xf32>
        %c1_30 = arith.constant 1 : index
        %c0_31 = arith.constant 0 : index
        %48 = vector.load %arg4[%c1_30, %c0_31] : memref<8x128xf32, #tpu.memory_space<vmem>>, vector<1x16xf32>
        %c2 = arith.constant 2 : index
        %c0_32 = arith.constant 0 : index
        %49 = vector.load %arg4[%c2, %c0_32] : memref<8x128xf32, #tpu.memory_space<vmem>>, vector<1x64xf32>
        %cst_33 = arith.constant 9.99999974E-6 : f32
        %50 = vector.broadcast %cst_33 : f32 to vector<1x16xf32>
        %51 = arith.addf %46, %50 : vector<1x16xf32>
        %52 = math.rsqrt %51 : vector<1x16xf32>
        %53 = arith.mulf %47, %52 : vector<1x16xf32>
        %54 = arith.mulf %39, %53 : vector<1x16xf32>
        %55 = arith.subf %48, %54 : vector<1x16xf32>
        %c0_34 = arith.constant 0 : index
        %c0_35 = arith.constant 0 : index
        %56 = vector.load %arg3[%c0_34, %c0_35] : memref<64x16xf32, #tpu.memory_space<vmem>>, vector<64x16xf32>
        %57 = vector.broadcast %53 : vector<1x16xf32> to vector<64x16xf32>
        %58 = arith.mulf %56, %57 : vector<64x16xf32>
        %c0_36 = arith.constant 0 : index
        %c0_37 = arith.constant 0 : index
        %59 = vector.load %arg8[%c0_36, %c0_37] : memref<64x16xf32, #tpu.memory_space<vmem>>, vector<64x16xf32>
        tpu.vector_store %arg8[%c0_36, %c0_37], %58 {strides = array<i32>} : memref<64x16xf32, #tpu.memory_space<vmem>>, vector<64x16xf32>,
        %cst_38 = arith.constant dense<0.000000e+00> : vector<1x64xf32>
        %60 = tpu.matmul %55, %56, %cst_38 {dimension_numbers = #tpu.dot_dimension_numbers<[1], [1], [0], [0], [0, 0, 1, 0], [], []>} : vector<1x16xf32>, vector<64x16xf32>, vector<1x64xf32> -> vector<1x64xf32>
        %61 = arith.addf %49, %60 : vector<1x64xf32>
        %c0_39 = arith.constant 0 : index
        %c0_40 = arith.constant 0 : index
        %62 = vector.load %arg9[%c0_39, %c0_40] : memref<1x64xf32, #tpu.memory_space<vmem>>, vector<1x64xf32>
        tpu.vector_store %arg9[%c0_39, %c0_40], %61 {strides = array<i32>} : memref<1x64xf32, #tpu.memory_space<vmem>>, vector<1x64xf32>,
        %cst_41 = arith.constant 0.000000e+00 : f32
        %63 = vector.broadcast %cst_41 : f32 to vector<2x64xf32>
        %c0_42 = arith.constant 0 : index
        %c0_43 = arith.constant 0 : index
        %64 = vector.load %arg7[%c0_42, %c0_43] : memref<2x64xf32, #tpu.memory_space<vmem>>, vector<2x64xf32>
        tpu.vector_store %arg7[%c0_42, %c0_43], %63 {strides = array<i32>} : memref<2x64xf32, #tpu.memory_space<vmem>>, vector<2x64xf32>,
      } else {
      }
      %c0_6 = arith.constant 0 : index
      %c0_7 = arith.constant 0 : index
      %13 = vector.load %arg8[%c0_6, %c0_7] : memref<64x16xf32, #tpu.memory_space<vmem>>, vector<64x16xf32>
      %cst = arith.constant dense<0.000000e+00> : vector<8x64xf32>
      %14 = tpu.matmul %0, %13, %cst {dimension_numbers = #tpu.dot_dimension_numbers<[1], [1], [0], [0], [0, 0, 1, 0], [], []>} : vector<8x16xf32>, vector<64x16xf32>, vector<8x64xf32> -> vector<8x64xf32>
      %c0_8 = arith.constant 0 : index
      %c0_9 = arith.constant 0 : index
      %15 = vector.load %arg9[%c0_8, %c0_9] : memref<1x64xf32, #tpu.memory_space<vmem>>, vector<1x64xf32>
      %16 = vector.broadcast %15 : vector<1x64xf32> to vector<8x64xf32>
      %17 = arith.addf %14, %16 : vector<8x64xf32>
      %18 = tpu.iota {dimensions = array<i32: 0>} : vector<8x64xi32>
      %c8_i32 = arith.constant 8 : i32
      %19 = arith.muli %arg1, %c8_i32 : i32
      %20 = vector.broadcast %19 : i32 to vector<8x64xi32>
      %21 = arith.addi %18, %20 : vector<8x64xi32>
      %c8_i32_10 = arith.constant 8 : i32
      %22 = vector.broadcast %c8_i32_10 : i32 to vector<8x64xi32>
      %23 = arith.cmpi slt, %21, %22 : vector<8x64xi32>
      %cst_11 = arith.constant 0.000000e+00 : f32
      %24 = vector.broadcast %cst_11 : f32 to vector<8x64xf32>
      %25 = arith.select %23, %17, %24 : vector<8x64xi1>, vector<8x64xf32>
      %c0_12 = arith.constant 0 : index
      %c0_13 = arith.constant 0 : index
      %26 = vector.load %arg7[%c0_12, %c0_13] : memref<2x64xf32, #tpu.memory_space<vmem>>, vector<1x64xf32>
      %cst_14 = arith.constant dense<0.000000e+00> : vector<64xf32>
      %27 = vector.multi_reduction <add>, %25, %cst_14 [0] : vector<8x64xf32> to vector<64xf32>
      %28 = vector.shape_cast %27 : vector<64xf32> to vector<1x64xf32>
      %29 = arith.addf %26, %28 : vector<1x64xf32>
      %c0_15 = arith.constant 0 : index
      %c0_16 = arith.constant 0 : index
      %30 = vector.load %arg7[%c0_15, %c0_16] : memref<2x64xf32, #tpu.memory_space<vmem>>, vector<1x64xf32>
      tpu.vector_store %arg7[%c0_15, %c0_16], %29 {strides = array<i32>} : memref<2x64xf32, #tpu.memory_space<vmem>>, vector<1x64xf32>,
      %c1 = arith.constant 1 : index
      %c0_17 = arith.constant 0 : index
      %31 = vector.load %arg7[%c1, %c0_17] : memref<2x64xf32, #tpu.memory_space<vmem>>, vector<1x64xf32>
      %32 = arith.mulf %25, %25 : vector<8x64xf32>
      %cst_18 = arith.constant dense<0.000000e+00> : vector<64xf32>
      %33 = vector.multi_reduction <add>, %32, %cst_18 [0] : vector<8x64xf32> to vector<64xf32>
      %34 = vector.shape_cast %33 : vector<64xf32> to vector<1x64xf32>
      %35 = arith.addf %31, %34 : vector<1x64xf32>
      %c1_19 = arith.constant 1 : index
      %c0_20 = arith.constant 0 : index
      %36 = vector.load %arg7[%c1_19, %c0_20] : memref<2x64xf32, #tpu.memory_space<vmem>>, vector<1x64xf32>
      tpu.vector_store %arg7[%c1_19, %c0_20], %35 {strides = array<i32>} : memref<2x64xf32, #tpu.memory_space<vmem>>, vector<1x64xf32>,
    } else {
    }
    %c2_i32 = arith.constant 2 : i32
    %7 = arith.cmpi eq, %arg0, %c2_i32 : i32
    %8 = arith.extui %7 : i1 to i32
    %c0_i32_3 = arith.constant 0 : i32
    %9 = arith.cmpi ne, %8, %c0_i32_3 : i32
    scf.if %9 {
      %c0_4 = arith.constant 0 : index
      %c0_5 = arith.constant 0 : index
      %10 = vector.load %arg8[%c0_4, %c0_5] : memref<64x16xf32, #tpu.memory_space<vmem>>, vector<64x16xf32>
      %cst = arith.constant dense<0.000000e+00> : vector<8x64xf32>
      %11 = tpu.matmul %0, %10, %cst {dimension_numbers = #tpu.dot_dimension_numbers<[1], [1], [0], [0], [0, 0, 1, 0], [], []>} : vector<8x16xf32>, vector<64x16xf32>, vector<8x64xf32> -> vector<8x64xf32>
      %c0_6 = arith.constant 0 : index
      %c0_7 = arith.constant 0 : index
      %12 = vector.load %arg9[%c0_6, %c0_7] : memref<1x64xf32, #tpu.memory_space<vmem>>, vector<1x64xf32>
      %13 = vector.broadcast %12 : vector<1x64xf32> to vector<8x64xf32>
      %14 = arith.addf %11, %13 : vector<8x64xf32>
      %c0_8 = arith.constant 0 : index
      %c0_9 = arith.constant 0 : index
      %15 = vector.load %arg7[%c0_8, %c0_9] : memref<2x64xf32, #tpu.memory_space<vmem>>, vector<1x64xf32>
      %cst_10 = arith.constant 1.250000e-01 : f32
      %16 = vector.broadcast %cst_10 : f32 to vector<1x64xf32>
      %17 = arith.mulf %15, %16 : vector<1x64xf32>
      %c1 = arith.constant 1 : index
      %c0_11 = arith.constant 0 : index
      %18 = vector.load %arg7[%c1, %c0_11] : memref<2x64xf32, #tpu.memory_space<vmem>>, vector<1x64xf32>
      %cst_12 = arith.constant 1.250000e-01 : f32
      %19 = vector.broadcast %cst_12 : f32 to vector<1x64xf32>
      %20 = arith.mulf %18, %19 : vector<1x64xf32>
      %21 = arith.mulf %17, %17 : vector<1x64xf32>
      %22 = arith.subf %20, %21 : vector<1x64xf32>
      %cst_13 = arith.constant 0.000000e+00 : f32
      %23 = vector.broadcast %cst_13 : f32 to vector<1x64xf32>
      %24 = arith.maximumf %22, %23 : vector<1x64xf32>
      %c3 = arith.constant 3 : index
      %c0_14 = arith.constant 0 : index
      %25 = vector.load %arg4[%c3, %c0_14] : memref<8x128xf32, #tpu.memory_space<vmem>>, vector<1x64xf32>
      %c4 = arith.constant 4 : index
      %c0_15 = arith.constant 0 : index
      %26 = vector.load %arg4[%c4, %c0_15] : memref<8x128xf32, #tpu.memory_space<vmem>>, vector<1x64xf32>
      %cst_16 = arith.constant 9.99999974E-6 : f32
      %27 = vector.broadcast %cst_16 : f32 to vector<1x64xf32>
      %28 = arith.addf %24, %27 : vector<1x64xf32>
      %29 = math.rsqrt %28 : vector<1x64xf32>
      %30 = arith.mulf %25, %29 : vector<1x64xf32>
      %31 = arith.mulf %17, %30 : vector<1x64xf32>
      %32 = arith.subf %26, %31 : vector<1x64xf32>
      %33 = vector.broadcast %30 : vector<1x64xf32> to vector<8x64xf32>
      %34 = arith.mulf %14, %33 : vector<8x64xf32>
      %35 = vector.broadcast %32 : vector<1x64xf32> to vector<8x64xf32>
      %36 = arith.addf %34, %35 : vector<8x64xf32>
      %cst_17 = arith.constant 0.000000e+00 : f32
      %37 = vector.broadcast %cst_17 : f32 to vector<8x64xf32>
      %38 = arith.maximumf %36, %37 : vector<8x64xf32>
      %c6 = arith.constant 6 : index
      %c0_18 = arith.constant 0 : index
      %39 = vector.load %arg4[%c6, %c0_18] : memref<8x128xf32, #tpu.memory_space<vmem>>, vector<1x64xf32>
      %40 = vector.broadcast %39 : vector<1x64xf32> to vector<8x64xf32>
      %41 = arith.mulf %38, %40 : vector<8x64xf32>
      %cst_19 = arith.constant dense<0.000000e+00> : vector<8xf32>
      %42 = vector.multi_reduction <add>, %41, %cst_19 [1] : vector<8x64xf32> to vector<8xf32>
      %43 = vector.shape_cast %42 : vector<8xf32> to vector<8x1xf32>
      %44 = vector.shape_cast %43 : vector<8x1xf32> to vector<8x1xf32>
      %45 = vector.broadcast %44 : vector<8x1xf32> to vector<8x128xf32>
      %c5 = arith.constant 5 : index
      %c0_20 = arith.constant 0 : index
      %46 = vector.load %arg4[%c5, %c0_20] : memref<8x128xf32, #tpu.memory_space<vmem>>, vector<1x128xf32>
      %47 = vector.broadcast %46 : vector<1x128xf32> to vector<8x128xf32>
      %48 = arith.addf %45, %47 : vector<8x128xf32>
      %c0_21 = arith.constant 0 : index
      %c0_22 = arith.constant 0 : index
      %49 = vector.load %arg5[%c0_21, %c0_22] : memref<8x128xf32, #tpu.memory_space<vmem>>, vector<8x128xf32>
      tpu.vector_store %arg5[%c0_21, %c0_22], %48 {strides = array<i32>} : memref<8x128xf32, #tpu.memory_space<vmem>>, vector<8x128xf32>,
    } else {
    }
    return
  }
  func.func @transform_0(%arg0: i32, %arg1: i32) -> (i32, i32) {
    %c0_i32 = arith.constant 0 : i32
    %c0_i32_0 = arith.constant 0 : i32
    return %arg1, %c0_i32 : i32, i32
  }
  func.func @transform_1(%arg0: i32, %arg1: i32) -> (i32, i32) {
    %c0_i32 = arith.constant 0 : i32
    %c0_i32_0 = arith.constant 0 : i32
    %c0_i32_1 = arith.constant 0 : i32
    return %c0_i32, %c0_i32_0 : i32, i32
  }
  func.func @transform_2(%arg0: i32, %arg1: i32) -> (i32, i32) {
    %c0_i32 = arith.constant 0 : i32
    %c0_i32_0 = arith.constant 0 : i32
    %c0_i32_1 = arith.constant 0 : i32
    return %c0_i32, %c0_i32_0 : i32, i32
  }
  func.func @transform_3(%arg0: i32, %arg1: i32) -> (i32, i32) {
    %c0_i32 = arith.constant 0 : i32
    %c0_i32_0 = arith.constant 0 : i32
    return %arg1, %c0_i32 : i32, i32
  }
}

</mosaic_0001>

<llo_original>
// kernel: tpu_custom_call.1
$region0: #{tpu_custom_call.1}
  #allocation0 [shape = 'u32[]', space=smem, size = 0x4, offset = 0x4, fixed_abs, tag = 'smem constant byte address 0x4 - core index']
  #allocation1 [shape = 'u32[144,128]{1,0:T(1,128)}', space=vmem, size = 0x12000, scoped, tag = 'internal scratch']
  #allocation2 [shape = 'f32[2,16]{1,0:T(2,128)}', space=vmem, size = 0x400, scoped, tag = 'scratch operand']
  #allocation3 [shape = 'f32[2,64]{1,0:T(2,128)}', space=vmem, size = 0x400, scoped, tag = 'scratch operand']
  #allocation4 [shape = 'f32[64,16]{1,0:T(8,128)}', space=vmem, size = 0x8000, scoped, tag = 'scratch operand']
  #allocation5 [shape = 'f32[1,64]{1,0:T(1,128)}', space=vmem, size = 0x200, scoped, tag = 'scratch operand']
  %s0 = inlined_call_operand.vmem [shape: f32[8,16], index: 0, kind: input, shape index: {}]
  %s1 = inlined_call_operand.vmem [shape: f32[64,16], index: 1, kind: input, shape index: {}]
  %s2 = inlined_call_operand.vmem [shape: f32[8,128], index: 2, kind: input, shape index: {}]
  %s3 = inlined_call_operand.hbm [shape: f32[8,128], index: 3, kind: output, shape index: {}]
  %s4 = sld [smem:[#allocation0]]
  $region65: #{tpu_custom_call.1} parent=0
    _
  %s6 = ssub.s32 1, %s4
  %s7 = scalar_select 0, %s6, %s4
  $region1: #{tpu_custom_call.1} parent=0
    #allocation6 [shape = 'u8[4096]{0}', space=vmem, size = 0x1000, scoped, tag = 'output window, operand 0, single buffered']
    #allocation7 [shape = 's32[2]{0}', space=sflag, size = 0x8, scoped, tag = 'scoped memory for tpu_custom_call.1']
    %8 = vsyncpa [#allocation7], 0
    loop: start=0, step=1, limit=5
    $region2: #{tpu_custom_call.1} parent=1 // loop_pre_header
      _
    $region3: #{tpu_custom_call.1} parent=1 // loop_header
      %s10 = sphi 0, %s14
      %p11 = scmp.ge.s32.totalorder %s10, 5
      %s17 = sphi 0, %s29
      %s18 = sphi 0, %s25
      %s19 = sphi 0, %s17
      %s20 = sphi 0, %s18
      %s21 = sphi 0, %s19
      %s22 = sphi 0, %s20
      %s32 = sphi 0, %s34
      %s35 = sphi 0, %s32
      %s36 = sphi 0, %s35
      %s52 = sphi 0, %s36
      %s56 = sphi 0, %s56
      %s58 = sphi 0, %s56
      %s59 = sphi 0, %s58
      %s73 = sphi 0, %s59
      %s77 = sphi 0, %s77
      %s79 = sphi 0, %s77
      %s80 = sphi 0, %s79
      %s94 = sphi 0, %s80
      %s100 = sphi 0, %s102
      %s103 = sphi 0, %s100
      %s104 = sphi 0, %s103
      %s120 = sphi 0, %s104
    $region4: #{tpu_custom_call.1} parent=1 // loop_header_branch
      %13 = sbr.rel (%p11) target = $region8
    $region5: #{tpu_custom_call.1} parent=1 // loop_body
      %s15 = ssub.s32 %s10, 1
      %s16 = ssub.s32 %s10, 2
      %s23 = sadd.s32 1, %s18
      %p24 = scmp.ge.s32.totalorder %s23, 1
      %s25 = scalar_select %p24, 0, %s23
      %s26 = sadd.s32 1, %s17
      %s27 = scalar_select %p24, %s26, %s17
      %p28 = scmp.ge.s32.totalorder %s27, 3
      %s29 = scalar_select %p28, 0, %s27
      %s30 = ssub.s32 %s18, %s25
      %p31 = scmp.eq.s32.totalorder %s30, 0
      %s33 = sadd.s32 %s32, 1
      %s34 = scalar_select %p31, %s32, %s33
      %p37 = pneg %p31
      %p38 = scmp.eq.s32.totalorder %s10, 2
      %p39 = por %p37, %p38
      %p40 = scmp.ne.s32.totalorder %s32, %s35
      %p41 = scmp.eq.s32.totalorder %s10, 0
      %p42 = por %p40, %p41
      %p43 = scmp.ne.s32.totalorder %s32, %s35
      %p44 = scmp.eq.s32.totalorder %s15, 2
      %p45 = por %p43, %p44
      %p46 = scmp.ne.s32.totalorder %s35, %s36
      %p47 = scmp.eq.s32.totalorder %s15, 0
      %p48 = por %p46, %p47
      %p49 = scmp.ne.s32.totalorder %s35, %s36
      %p50 = scmp.eq.s32.totalorder %s16, 2
      %p51 = por %p49, %p50
      %p53 = scmp.ne.s32.totalorder %s36, %s52
      %p54 = scmp.eq.s32.totalorder %s16, 0
      %p55 = por %p53, %p54
      %s57 = sadd.s32 %s56, 1
      %p60 = scmp.eq.s32.totalorder %s10, 2
      %p61 = scmp.ne.s32.totalorder %s56, %s58
      %p62 = scmp.eq.s32.totalorder %s10, 0
      %p63 = por %p61, %p62
      %p64 = scmp.ne.s32.totalorder %s56, %s58
      %p65 = scmp.eq.s32.totalorder %s15, 2
      %p66 = por %p64, %p65
      %p67 = scmp.ne.s32.totalorder %s58, %s59
      %p68 = scmp.eq.s32.totalorder %s15, 0
      %p69 = por %p67, %p68
      %p70 = scmp.ne.s32.totalorder %s58, %s59
      %p71 = scmp.eq.s32.totalorder %s16, 2
      %p72 = por %p70, %p71
      %p74 = scmp.ne.s32.totalorder %s59, %s73
      %p75 = scmp.eq.s32.totalorder %s16, 0
      %p76 = por %p74, %p75
      %s78 = sadd.s32 %s77, 1
      %p81 = scmp.eq.s32.totalorder %s10, 2
      %p82 = scmp.ne.s32.totalorder %s77, %s79
      %p83 = scmp.eq.s32.totalorder %s10, 0
      %p84 = por %p82, %p83
      %p85 = scmp.ne.s32.totalorder %s77, %s79
      %p86 = scmp.eq.s32.totalorder %s15, 2
      %p87 = por %p85, %p86
      %p88 = scmp.ne.s32.totalorder %s79, %s80
      %p89 = scmp.eq.s32.totalorder %s15, 0
      %p90 = por %p88, %p89
      %p91 = scmp.ne.s32.totalorder %s79, %s80
      %p92 = scmp.eq.s32.totalorder %s16, 2
      %p93 = por %p91, %p92
      %p95 = scmp.ne.s32.totalorder %s80, %s94
      %p96 = scmp.eq.s32.totalorder %s16, 0
      %p97 = por %p95, %p96
      %s98 = ssub.s32 %s18, %s25
      %p99 = scmp.eq.s32.totalorder %s98, 0
      %s101 = sadd.s32 %s100, 1
      %s102 = scalar_select %p99, %s100, %s101
      %p105 = pneg %p99
      %p106 = scmp.eq.s32.totalorder %s10, 2
      %p107 = por %p105, %p106
      %p108 = scmp.ne.s32.totalorder %s100, %s103
      %p109 = scmp.eq.s32.totalorder %s10, 0
      %p110 = por %p108, %p109
      %p111 = scmp.ne.s32.totalorder %s100, %s103
      %p112 = scmp.eq.s32.totalorder %s15, 2
      %p113 = por %p111, %p112
      %p114 = scmp.ne.s32.totalorder %s103, %s104
      %p115 = scmp.eq.s32.totalorder %s15, 0
      %p116 = por %p114, %p115
      %p117 = scmp.ne.s32.totalorder %s103, %s104
      %p118 = scmp.eq.s32.totalorder %s16, 2
      %p119 = por %p117, %p118
      %p121 = scmp.ne.s32.totalorder %s104, %s120
      %p122 = scmp.eq.s32.totalorder %s16, 0
      %p123 = por %p121, %p122
      %p124 = scmp.le.s32.totalorder 1, %s10
      %p125 = scmp.lt.s32.totalorder %s10, 4
      %p126 = pnand %p124, %p125
      %p127 = pneg %p126
      // Predicated region
      $region9: #{tpu_custom_call.1} parent=5 // pred_check
        _
      $region10: #{tpu_custom_call.1} parent=5 // pred_check_branch
        %129 = sbr.rel (%p126) target = $region12
      $region11: #{tpu_custom_call.1} parent=5 // pred_region
        %s130 = ssub.s32 %s10, 1
        // Predicated region
        $region13: #{tpu_custom_call.1} parent=11 // pred_check
          %p131 = pneg %p48
        $region14: #{tpu_custom_call.1} parent=11 // pred_check_branch
          %133 = sbr.rel (%p131) target = $region16
        $region15: #{tpu_custom_call.1} parent=11 // pred_region
          %p134 = scmp.lt.s32.totalorder %s20, 0
          %s135 = scalar_select %p134, %s20, 0
          %s136 = smul.addr %s135, 8
          %s137 = scalar_lea.vmem %s0, %s136
        $region16: #{tpu_custom_call.1} parent=11 // pred_fallthru
          _
        // Predicated region
        $region17: #{tpu_custom_call.1} parent=11 // pred_check
          %p138 = pneg %p69
        $region18: #{tpu_custom_call.1} parent=11 // pred_check_branch
          %140 = sbr.rel (%p138) target = $region20
        $region19: #{tpu_custom_call.1} parent=11 // pred_region
          _
        $region20: #{tpu_custom_call.1} parent=11 // pred_fallthru
          _
        // Predicated region
        $region21: #{tpu_custom_call.1} parent=11 // pred_check
          %p141 = pneg %p90
        $region22: #{tpu_custom_call.1} parent=11 // pred_check_branch
          %143 = sbr.rel (%p141) target = $region24
        $region23: #{tpu_custom_call.1} parent=11 // pred_region
          _
        $region24: #{tpu_custom_call.1} parent=11 // pred_fallthru
          _
      $region12: #{tpu_custom_call.1} parent=5 // pred_fallthru
        _
      %p144 = scmp.lt.s32.totalorder %s10, 3
      // Predicated region
      $region25: #{tpu_custom_call.1} parent=5 // pred_check
        %p145 = pneg %p144
      $region26: #{tpu_custom_call.1} parent=5 // pred_check_branch
        %147 = sbr.rel (%p145) target = $region28
      $region27: #{tpu_custom_call.1} parent=5 // pred_region
        _
      $region28: #{tpu_custom_call.1} parent=5 // pred_fallthru
        _
      %p148 = scmp.le.s32.totalorder 1, %s10
      %p149 = scmp.lt.s32.totalorder %s10, 4
      %p150 = pnand %p148, %p149
      %p151 = pneg %p150
      // Predicated region
      $region29: #{tpu_custom_call.1} parent=5 // pred_check
        _
      $region30: #{tpu_custom_call.1} parent=5 // pred_check_branch
        %153 = sbr.rel (%p150) target = $region32
      $region31: #{tpu_custom_call.1} parent=5 // pred_region
        %s154 = ssub.s32 %s10, 1
        %p155 = scmp.lt.s32.totalorder %s20, 0
        %s156 = scalar_select %p155, %s20, 0
        %s157 = smul.addr %s156, 8
        %s158 = scalar_lea.vmem %s0, %s157
        %p159 = pneg %p48
        %p160 = pneg %p45
        %p161 = pneg %p69
        %p162 = pneg %p66
        %p163 = pneg %p90
        %p164 = pneg %p87
        %p165 = pneg %p116
        %p166 = pneg %p113
        %p167 = scmp.lt.s32.totalorder %s20, 0
        %s168 = scalar_select %p167, %s20, 0
        %s169 = smul.addr %s168, 8
        %s170 = scalar_lea.vmem %s0, %s169
        %v171 = vld [vmem:[%s170] sm:$0xff]
        %p172 = scmp.eq.s32.totalorder %s19, 0
        // Predicated region
        $region33: #{tpu_custom_call.1} parent=31 // pred_check
          %p173 = pneg %p172
        $region34: #{tpu_custom_call.1} parent=31 // pred_check_branch
          %175 = sbr.rel (%p173) target = $region36
        $region35: #{tpu_custom_call.1} parent=31 // pred_region
          %p176 = scmp.eq.s32.totalorder %s20, 0
          // Predicated region
          $region37: #{tpu_custom_call.1} parent=35 // pred_check
            %p177 = pneg %p176
          $region38: #{tpu_custom_call.1} parent=35 // pred_check_branch
            %179 = sbr.rel (%p177) target = $region40
          $region39: #{tpu_custom_call.1} parent=35 // pred_region
            %vm180 = vcmask 123904
            %181 = vst.msk [vmem:[#allocation2] sm:$0x3] %vm180, 0.0
          $region40: #{tpu_custom_call.1} parent=35 // pred_fallthru
            _
          %v182 = vld [vmem:[#allocation2] sm:$0x1]
          %vm183 = vcmask 130048
          %v184 = vsel %vm183, %v171, 0.0
          %v185 = vrot.slane %v184, 4
          %v186 = vadd.f32 %v184, %v185
          %v187 = vrot.slane %v186, 2
          %v188 = vadd.f32 %v186, %v187
          %v189 = vrot.slane %v188, 1
          %v190 = vadd.f32 %v188, %v189
          %v191 = vadd.f32 %v182, %v190
          %vm192 = vcmask 122880
          %193 = vst.msk [vmem:[#allocation2] sm:$0x1] %vm192, %v191
          %v194 = vld [vmem:[#allocation2 + $0x1] sm:$0x1]
          %v195 = vmul.f32 %v171, %v171
          %v196 = vsel %vm183, %v195, 0.0
          %v197 = vrot.slane %v196, 4
          %v198 = vadd.f32 %v196, %v197
          %v199 = vrot.slane %v198, 2
          %v200 = vadd.f32 %v198, %v199
          %v201 = vrot.slane %v200, 1
          %v202 = vadd.f32 %v200, %v201
          %v203 = vadd.f32 %v194, %v202
          %204 = vst.msk [vmem:[#allocation2 + $0x1] sm:$0x1] %vm192, %v203
        $region36: #{tpu_custom_call.1} parent=31 // pred_fallthru
          _
        %p205 = scmp.eq.s32.totalorder %s19, 1
        // Predicated region
        $region41: #{tpu_custom_call.1} parent=31 // pred_check
          %p206 = pneg %p205
        $region42: #{tpu_custom_call.1} parent=31 // pred_check_branch
          %208 = sbr.rel (%p206) target = $region44
        $region43: #{tpu_custom_call.1} parent=31 // pred_region
          %p209 = scmp.eq.s32.totalorder %s20, 0
          // Predicated region
          $region45: #{tpu_custom_call.1} parent=43 // pred_check
            %p210 = pneg %p209
          $region46: #{tpu_custom_call.1} parent=43 // pred_check_branch
            %212 = sbr.rel (%p210) target = $region48
          $region47: #{tpu_custom_call.1} parent=43 // pred_region
            %v213 = vld [vmem:[#allocation2] sm:$0x1]
            %v214 = vmul.f32 %v213, 0.125
            %v215 = vld [vmem:[#allocation2 + $0x1] sm:$0x1]
            %v216 = vmul.f32 %v215, 0.125
            %v217 = vmul.f32 %v214, %v214
            %v218 = vsub.f32 %v216, %v217
            %v219 = vmax.f32 %v218, 0.0
            %v220 = vld [vmem:[%s2] sm:$0x1]
            %v221 = vld [vmem:[%s2 + $0x1] sm:$0x1]
            %v222 = vld [vmem:[%s2 + $0x2] sm:$0x1]
            %v223 = vadd.f32 %v219, 1e-05
            %v224 = vrsqrt.pop %v223
            %v225 = vmul.f32 %v220, %v224
            %v226 = vmul.f32 %v214, %v225
            %v227 = vsub.f32 %v221, %v226
            %v228 = vld [vmem:[%s1] sm:$0xff]
            %v229 = vld [vmem:[%s1 + $0x8] sm:$0xff]
            %v230 = vld [vmem:[%s1 + $0x10] sm:$0xff]
            %v231 = vld [vmem:[%s1 + $0x18] sm:$0xff]
            %v232 = vld [vmem:[%s1 + $0x20] sm:$0xff]
            %v233 = vld [vmem:[%s1 + $0x28] sm:$0xff]
            %v234 = vld [vmem:[%s1 + $0x30] sm:$0xff]
            %v235 = vld [vmem:[%s1 + $0x38] sm:$0xff]
            %v236 = vlaneseq
            %v237 = vshrl.u32 %v236, 7
            %v238 = vsub.s32 0, %v237
            %v239 = vrot.slane %v225, %v238
            %v240 = vmul.f32 %v228, %v239
            %v241 = vmul.f32 %v229, %v239
            %v242 = vmul.f32 %v230, %v239
            %v243 = vmul.f32 %v231, %v239
            %v244 = vmul.f32 %v232, %v239
            %v245 = vmul.f32 %v233, %v239
            %v246 = vmul.f32 %v234, %v239
            %v247 = vmul.f32 %v235, %v239
            %vm248 = vcmask 130048
            %249 = vst.msk [vmem:[#allocation4] sm:$0xff] %vm248, %v240
            %250 = vst.msk [vmem:[#allocation4 + $0x8] sm:$0xff] %vm248, %v241
            %251 = vst.msk [vmem:[#allocation4 + $0x10] sm:$0xff] %vm248, %v242
            %252 = vst.msk [vmem:[#allocation4 + $0x18] sm:$0xff] %vm248, %v243
            %253 = vst.msk [vmem:[#allocation4 + $0x20] sm:$0xff] %vm248, %v244
            %254 = vst.msk [vmem:[#allocation4 + $0x28] sm:$0xff] %vm248, %v245
            %255 = vst.msk [vmem:[#allocation4 + $0x30] sm:$0xff] %vm248, %v246
            %256 = vst.msk [vmem:[#allocation4 + $0x38] sm:$0xff] %vm248, %v247
            %v258 = vsel %vm248, %v227, 0
            %v261 = vsel %vm248, %v228, 0
            %v264 = vsel %vm248, %v229, 0
            %v267 = vsel %vm248, %v230, 0
            %v270 = vsel %vm248, %v231, 0
            %v273 = vsel %vm248, %v232, 0
            %v276 = vsel %vm248, %v233, 0
            %v279 = vsel %vm248, %v234, 0
            %v282 = vsel %vm248, %v235, 0
            %284 = vmatprep.subr.mxu0 0.0
            %285 = vmatpush1.xpose.msra.mxu0 0.0
            %286 = vmatprep.subr.mxu0 0.0
            %287 = vmatpush1.xpose.msra.mxu0 0.0
            %288 = vmatprep.subr.mxu0 0.0
            %289 = vmatpush1.xpose.msra.mxu0 0.0
            %290 = vmatprep.subr.mxu0 0.0
            %291 = vmatpush1.xpose.msra.mxu0 0.0
            %292 = vmatprep.subr.mxu0 0.0
            %293 = vmatpush1.xpose.msra.mxu0 0.0
            %294 = vmatprep.subr.mxu0 0.0
            %295 = vmatpush1.xpose.msra.mxu0 0.0
            %296 = vmatprep.subr.mxu0 0.0
            %297 = vmatpush1.xpose.msra.mxu0 0.0
            %298 = vmatprep.subr.mxu0 0.0
            %299 = vmatpush1.xpose.msra.mxu0 0.0
            %300 = vmatprep.subr.mxu0 0.0
            %301 = vmatpush1.xpose.msra.mxu0 %v282
            %302 = vmatprep.subr.mxu0 0.0
            %303 = vmatpush1.xpose.msra.mxu0 %v279
            %304 = vmatprep.subr.mxu0 0.0
            %305 = vmatpush1.xpose.msra.mxu0 %v276
            %306 = vmatprep.subr.mxu0 0.0
            %307 = vmatpush1.xpose.msra.mxu0 %v273
            %308 = vmatprep.subr.mxu0 0.0
            %309 = vmatpush1.xpose.msra.mxu0 %v270
            %310 = vmatprep.subr.mxu0 0.0
            %311 = vmatpush1.xpose.msra.mxu0 %v267
            %312 = vmatprep.subr.mxu0 0.0
            %313 = vmatpush1.xpose.msra.mxu0 %v264
            %314 = vmatprep.subr.mxu0 0.0
            %315 = vmatpush1.xpose.msra.mxu0 %v261
            %316 = vmatprep.subr.mxu0 0.0
            %317 = vmatpush2.xpose.msra.mxu0 0.0
            %318 = vmatprep.subr.mxu0 0.0
            %319 = vmatpush2.xpose.msra.mxu0 0.0
            %320 = vmatprep.subr.mxu0 0.0
            %321 = vmatpush2.xpose.msra.mxu0 0.0
            %322 = vmatprep.subr.mxu0 0.0
            %323 = vmatpush2.xpose.msra.mxu0 0.0
            %324 = vmatprep.subr.mxu0 0.0
            %325 = vmatpush2.xpose.msra.mxu0 0.0
            %326 = vmatprep.subr.mxu0 0.0
            %327 = vmatpush2.xpose.msra.mxu0 0.0
            %328 = vmatprep.subr.mxu0 0.0
            %329 = vmatpush2.xpose.msra.mxu0 0.0
            %330 = vmatprep.subr.mxu0 0.0
            %331 = vmatpush2.xpose.msra.mxu0 0.0
            %332 = vmatprep.subr.mxu0 0.0
            %333 = vmatpush2.xpose.msra.mxu0 0.0
            %334 = vmatprep.subr.mxu0 0.0
            %335 = vmatpush2.xpose.msra.mxu0 0.0
            %336 = vmatprep.subr.mxu0 0.0
            %337 = vmatpush2.xpose.msra.mxu0 0.0
            %338 = vmatprep.subr.mxu0 0.0
            %339 = vmatpush2.xpose.msra.mxu0 0.0
            %340 = vmatprep.subr.mxu0 0.0
            %341 = vmatpush2.xpose.msra.mxu0 0.0
            %342 = vmatprep.subr.mxu0 0.0
            %343 = vmatpush2.xpose.msra.mxu0 0.0
            %344 = vmatprep.subr.mxu0 0.0
            %345 = vmatpush2.xpose.msra.mxu0 0.0
            %346 = vmatprep.subr.mxu0 0.0
            %347 = vmatpush2.xpose.msra.mxu0 0.0
            %348 = vmatprep.mubr.f32.mxu0 0.0
            %349 = vmatmul.mubr.f32.gmra.mxu0 %v258
            %v350 = vpop.f32.mrf.mxu0
            %v351 = vadd.f32 0.0, %v350
            %v352 = vpop.f32.mrf.mxu0
            %353 = vdwg.mxu0
            %v354 = vadd.f32 %v222, %v351
            %vm355 = vcmask 516096
            %356 = vst.msk [vmem:[#allocation5] sm:$0x1] %vm355, %v354
            %vm357 = vcmask 517120
            %358 = vst.msk [vmem:[#allocation3] sm:$0x3] %vm357, 0.0
          $region48: #{tpu_custom_call.1} parent=43 // pred_fallthru
            _
          %v359 = vld [vmem:[#allocation4] sm:$0xff]
          %v360 = vld [vmem:[#allocation4 + $0x8] sm:$0xff]
          %v361 = vld [vmem:[#allocation4 + $0x10] sm:$0xff]
          %v362 = vld [vmem:[#allocation4 + $0x18] sm:$0xff]
          %v363 = vld [vmem:[#allocation4 + $0x20] sm:$0xff]
          %v364 = vld [vmem:[#allocation4 + $0x28] sm:$0xff]
          %v365 = vld [vmem:[#allocation4 + $0x30] sm:$0xff]
          %v366 = vld [vmem:[#allocation4 + $0x38] sm:$0xff]
          %v367 = vld [vmem:[#allocation5] sm:$0x1]
          %v369 = vlaneseq
          %v370 = vshrl.u32 %v369, 7
          %v371 = vsub.s32 0, %v370
          %v372 = vrot.slane %v367, %v371
          %vm374 = vcmask 130048
          %v376 = vsel %vm374, %v171, 0
          %v379 = vsel %vm374, %v359, 0
          %v382 = vsel %vm374, %v360, 0
          %v385 = vsel %vm374, %v361, 0
          %v388 = vsel %vm374, %v362, 0
          %v391 = vsel %vm374, %v363, 0
          %v394 = vsel %vm374, %v364, 0
          %v397 = vsel %vm374, %v365, 0
          %v400 = vsel %vm374, %v366, 0
          %402 = vmatprep.subr.mxu0 0.0
          %403 = vmatpush1.xpose.msra.mxu0 0.0
          %404 = vmatprep.subr.mxu0 0.0
          %405 = vmatpush1.xpose.msra.mxu0 0.0
          %406 = vmatprep.subr.mxu0 0.0
          %407 = vmatpush1.xpose.msra.mxu0 0.0
          %408 = vmatprep.subr.mxu0 0.0
          %409 = vmatpush1.xpose.msra.mxu0 0.0
          %410 = vmatprep.subr.mxu0 0.0
          %411 = vmatpush1.xpose.msra.mxu0 0.0
          %412 = vmatprep.subr.mxu0 0.0
          %413 = vmatpush1.xpose.msra.mxu0 0.0
          %414 = vmatprep.subr.mxu0 0.0
          %415 = vmatpush1.xpose.msra.mxu0 0.0
          %416 = vmatprep.subr.mxu0 0.0
          %417 = vmatpush1.xpose.msra.mxu0 0.0
          %418 = vmatprep.subr.mxu0 0.0
          %419 = vmatpush1.xpose.msra.mxu0 %v400
          %420 = vmatprep.subr.mxu0 0.0
          %421 = vmatpush1.xpose.msra.mxu0 %v397
          %422 = vmatprep.subr.mxu0 0.0
          %423 = vmatpush1.xpose.msra.mxu0 %v394
          %424 = vmatprep.subr.mxu0 0.0
          %425 = vmatpush1.xpose.msra.mxu0 %v391
          %426 = vmatprep.subr.mxu0 0.0
          %427 = vmatpush1.xpose.msra.mxu0 %v388
          %428 = vmatprep.subr.mxu0 0.0
          %429 = vmatpush1.xpose.msra.mxu0 %v385
          %430 = vmatprep.subr.mxu0 0.0
          %431 = vmatpush1.xpose.msra.mxu0 %v382
          %432 = vmatprep.subr.mxu0 0.0
          %433 = vmatpush1.xpose.msra.mxu0 %v379
          %434 = vmatprep.subr.mxu0 0.0
          %435 = vmatpush2.xpose.msra.mxu0 0.0
          %436 = vmatprep.subr.mxu0 0.0
          %437 = vmatpush2.xpose.msra.mxu0 0.0
          %438 = vmatprep.subr.mxu0 0.0
          %439 = vmatpush2.xpose.msra.mxu0 0.0
          %440 = vmatprep.subr.mxu0 0.0
          %441 = vmatpush2.xpose.msra.mxu0 0.0
          %442 = vmatprep.subr.mxu0 0.0
          %443 = vmatpush2.xpose.msra.mxu0 0.0
          %444 = vmatprep.subr.mxu0 0.0
          %445 = vmatpush2.xpose.msra.mxu0 0.0
          %446 = vmatprep.subr.mxu0 0.0
          %447 = vmatpush2.xpose.msra.mxu0 0.0
          %448 = vmatprep.subr.mxu0 0.0
          %449 = vmatpush2.xpose.msra.mxu0 0.0
          %450 = vmatprep.subr.mxu0 0.0
          %451 = vmatpush2.xpose.msra.mxu0 0.0
          %452 = vmatprep.subr.mxu0 0.0
          %453 = vmatpush2.xpose.msra.mxu0 0.0
          %454 = vmatprep.subr.mxu0 0.0
          %455 = vmatpush2.xpose.msra.mxu0 0.0
          %456 = vmatprep.subr.mxu0 0.0
          %457 = vmatpush2.xpose.msra.mxu0 0.0
          %458 = vmatprep.subr.mxu0 0.0
          %459 = vmatpush2.xpose.msra.mxu0 0.0
          %460 = vmatprep.subr.mxu0 0.0
          %461 = vmatpush2.xpose.msra.mxu0 0.0
          %462 = vmatprep.subr.mxu0 0.0
          %463 = vmatpush2.xpose.msra.mxu0 0.0
          %464 = vmatprep.subr.mxu0 0.0
          %465 = vmatpush2.xpose.msra.mxu0 0.0
          %466 = vmatprep.mubr.f32.mxu0 0.0
          %467 = vmatmul.mubr.f32.gmra.mxu0 %v376
          %v468 = vpop.f32.mrf.mxu0
          %v469 = vadd.f32 %v372, %v468
          %v470 = vpop.f32.mrf.mxu0
          %471 = vdwg.mxu0
          %v472 = vlaneseq
          %v473 = vshrl.u32 %v472, 7
          %s474 = smul.u32 %s20, 8
          %v475 = vstv %s474
          %v476 = vadd.s32 %v473, %v475
          %vm477 = vcmp.lt.s32.totalorder %v476, 8
          %v478 = vsel %vm477, %v469, 0.0
          %v479 = vld [vmem:[#allocation3] sm:$0x1]
          %vm480 = vcmask 523264
          %v481 = vsel %vm480, %v478, 0.0
          %v482 = vrot.slane %v481, 4
          %v483 = vadd.f32 %v481, %v482
          %v484 = vrot.slane %v483, 2
          %v485 = vadd.f32 %v483, %v484
          %v486 = vrot.slane %v485, 1
          %v487 = vadd.f32 %v485, %v486
          %v488 = vadd.f32 %v479, %v487
          %vm489 = vcmask 516096
          %490 = vst.msk [vmem:[#allocation3] sm:$0x1] %vm489, %v488
          %v491 = vld [vmem:[#allocation3 + $0x1] sm:$0x1]
          %v492 = vmul.f32 %v478, %v478
          %v493 = vsel %vm480, %v492, 0.0
          %v494 = vrot.slane %v493, 4
          %v495 = vadd.f32 %v493, %v494
          %v496 = vrot.slane %v495, 2
          %v497 = vadd.f32 %v495, %v496
          %v498 = vrot.slane %v497, 1
          %v499 = vadd.f32 %v497, %v498
          %v500 = vadd.f32 %v491, %v499
          %501 = vst.msk [vmem:[#allocation3 + $0x1] sm:$0x1] %vm489, %v500
        $region44: #{tpu_custom_call.1} parent=31 // pred_fallthru
          _
        %p502 = scmp.eq.s32.totalorder %s19, 2
        // Predicated region
        $region49: #{tpu_custom_call.1} parent=31 // pred_check
          %p503 = pneg %p502
        $region50: #{tpu_custom_call.1} parent=31 // pred_check_branch
          %505 = sbr.rel (%p503) target = $region52
        $region51: #{tpu_custom_call.1} parent=31 // pred_region
          %v506 = vld [vmem:[#allocation4] sm:$0xff]
          %v507 = vld [vmem:[#allocation4 + $0x8] sm:$0xff]
          %v508 = vld [vmem:[#allocation4 + $0x10] sm:$0xff]
          %v509 = vld [vmem:[#allocation4 + $0x18] sm:$0xff]
          %v510 = vld [vmem:[#allocation4 + $0x20] sm:$0xff]
          %v511 = vld [vmem:[#allocation4 + $0x28] sm:$0xff]
          %v512 = vld [vmem:[#allocation4 + $0x30] sm:$0xff]
          %v513 = vld [vmem:[#allocation4 + $0x38] sm:$0xff]
          %v514 = vld [vmem:[#allocation5] sm:$0x1]
          %v516 = vlaneseq
          %v517 = vshrl.u32 %v516, 7
          %v518 = vsub.s32 0, %v517
          %v519 = vrot.slane %v514, %v518
          %vm521 = vcmask 130048
          %v523 = vsel %vm521, %v171, 0
          %v526 = vsel %vm521, %v506, 0
          %v529 = vsel %vm521, %v507, 0
          %v532 = vsel %vm521, %v508, 0
          %v535 = vsel %vm521, %v509, 0
          %v538 = vsel %vm521, %v510, 0
          %v541 = vsel %vm521, %v511, 0
          %v544 = vsel %vm521, %v512, 0
          %v547 = vsel %vm521, %v513, 0
          %549 = vmatprep.subr.mxu0 0.0
          %550 = vmatpush1.xpose.msra.mxu0 0.0
          %551 = vmatprep.subr.mxu0 0.0
          %552 = vmatpush1.xpose.msra.mxu0 0.0
          %553 = vmatprep.subr.mxu0 0.0
          %554 = vmatpush1.xpose.msra.mxu0 0.0
          %555 = vmatprep.subr.mxu0 0.0
          %556 = vmatpush1.xpose.msra.mxu0 0.0
          %557 = vmatprep.subr.mxu0 0.0
          %558 = vmatpush1.xpose.msra.mxu0 0.0
          %559 = vmatprep.subr.mxu0 0.0
          %560 = vmatpush1.xpose.msra.mxu0 0.0
          %561 = vmatprep.subr.mxu0 0.0
          %562 = vmatpush1.xpose.msra.mxu0 0.0
          %563 = vmatprep.subr.mxu0 0.0
          %564 = vmatpush1.xpose.msra.mxu0 0.0
          %565 = vmatprep.subr.mxu0 0.0
          %566 = vmatpush1.xpose.msra.mxu0 %v547
          %567 = vmatprep.subr.mxu0 0.0
          %568 = vmatpush1.xpose.msra.mxu0 %v544
          %569 = vmatprep.subr.mxu0 0.0
          %570 = vmatpush1.xpose.msra.mxu0 %v541
          %571 = vmatprep.subr.mxu0 0.0
          %572 = vmatpush1.xpose.msra.mxu0 %v538
          %573 = vmatprep.subr.mxu0 0.0
          %574 = vmatpush1.xpose.msra.mxu0 %v535
          %575 = vmatprep.subr.mxu0 0.0
          %576 = vmatpush1.xpose.msra.mxu0 %v532
          %577 = vmatprep.subr.mxu0 0.0
          %578 = vmatpush1.xpose.msra.mxu0 %v529
          %579 = vmatprep.subr.mxu0 0.0
          %580 = vmatpush1.xpose.msra.mxu0 %v526
          %581 = vmatprep.subr.mxu0 0.0
          %582 = vmatpush2.xpose.msra.mxu0 0.0
          %583 = vmatprep.subr.mxu0 0.0
          %584 = vmatpush2.xpose.msra.mxu0 0.0
          %585 = vmatprep.subr.mxu0 0.0
          %586 = vmatpush2.xpose.msra.mxu0 0.0
          %587 = vmatprep.subr.mxu0 0.0
          %588 = vmatpush2.xpose.msra.mxu0 0.0
          %589 = vmatprep.subr.mxu0 0.0
          %590 = vmatpush2.xpose.msra.mxu0 0.0
          %591 = vmatprep.subr.mxu0 0.0
          %592 = vmatpush2.xpose.msra.mxu0 0.0
          %593 = vmatprep.subr.mxu0 0.0
          %594 = vmatpush2.xpose.msra.mxu0 0.0
          %595 = vmatprep.subr.mxu0 0.0
          %596 = vmatpush2.xpose.msra.mxu0 0.0
          %597 = vmatprep.subr.mxu0 0.0
          %598 = vmatpush2.xpose.msra.mxu0 0.0
          %599 = vmatprep.subr.mxu0 0.0
          %600 = vmatpush2.xpose.msra.mxu0 0.0
          %601 = vmatprep.subr.mxu0 0.0
          %602 = vmatpush2.xpose.msra.mxu0 0.0
          %603 = vmatprep.subr.mxu0 0.0
          %604 = vmatpush2.xpose.msra.mxu0 0.0
          %605 = vmatprep.subr.mxu0 0.0
          %606 = vmatpush2.xpose.msra.mxu0 0.0
          %607 = vmatprep.subr.mxu0 0.0
          %608 = vmatpush2.xpose.msra.mxu0 0.0
          %609 = vmatprep.subr.mxu0 0.0
          %610 = vmatpush2.xpose.msra.mxu0 0.0
          %611 = vmatprep.subr.mxu0 0.0
          %612 = vmatpush2.xpose.msra.mxu0 0.0
          %613 = vmatprep.mubr.f32.mxu0 0.0
          %614 = vmatmul.mubr.f32.gmra.mxu0 %v523
          %v615 = vpop.f32.mrf.mxu0
          %v616 = vadd.f32 %v519, %v615
          %v617 = vpop.f32.mrf.mxu0
          %618 = vdwg.mxu0
          %v619 = vld [vmem:[#allocation3] sm:$0x1]
          %v620 = vmul.f32 %v619, 0.125
          %v621 = vld [vmem:[#allocation3 + $0x1] sm:$0x1]
          %v622 = vmul.f32 %v621, 0.125
          %v623 = vmul.f32 %v620, %v620
          %v624 = vsub.f32 %v622, %v623
          %v625 = vmax.f32 %v624, 0.0
          %v626 = vld [vmem:[%s2 + $0x3] sm:$0x1]
          %v627 = vld [vmem:[%s2 + $0x4] sm:$0x1]
          %v628 = vadd.f32 %v625, 1e-05
          %v629 = vrsqrt.pop %v628
          %v630 = vmul.f32 %v626, %v629
          %v631 = vmul.f32 %v620, %v630
          %v632 = vsub.f32 %v627, %v631
          %v633 = vlaneseq
          %v634 = vshrl.u32 %v633, 7
          %v635 = vsub.s32 0, %v634
          %v636 = vrot.slane %v630, %v635
          %v637 = vmul.f32 %v616, %v636
          %v638 = vlaneseq
          %v639 = vshrl.u32 %v638, 7
          %v640 = vsub.s32 0, %v639
          %v641 = vrot.slane %v632, %v640
          %v642 = vadd.f32 %v637, %v641
          %v643 = vmax.f32 %v642, 0.0
          %v644 = vld [vmem:[%s2 + $0x6] sm:$0x1]
          %v645 = vlaneseq
          %v646 = vshrl.u32 %v645, 7
          %v647 = vsub.s32 0, %v646
          %v648 = vrot.slane %v644, %v647
          %v649 = vmul.f32 %v643, %v648
          %vm650 = vcmask 523264
          %v651 = vsel %vm650, %v649, 0.0
          %652 = vadd.xlane.f32.xlu0 %v651
          %v653 = vpop.xlane.xlu0 %652
          %v654 = vld [vmem:[%s2 + $0x5] sm:$0x1]
          %v655 = vlaneseq
          %v656 = vshrl.u32 %v655, 7
          %v657 = vsub.s32 0, %v656
          %v658 = vrot.slane %v654, %v657
          %v659 = vadd.f32 %v653, %v658
          %660 = vst [vmem:[#allocation6] sm:$0xff] %v659
        $region52: #{tpu_custom_call.1} parent=31 // pred_fallthru
          _
        // Predicated region
        $region53: #{tpu_custom_call.1} parent=31 // pred_check
          %p661 = pneg %p113
        $region54: #{tpu_custom_call.1} parent=31 // pred_check_branch
          %663 = sbr.rel (%p661) target = $region56
        $region55: #{tpu_custom_call.1} parent=31 // pred_region
          %s665 = ssub.s32 128, 128
          %666 = vsyncadd [#allocation7], %s665
          %s667 = smul.addr %s20, 128
          %s668 = scalar_lea.hbm %s3, %s667
          %s670 = sshll.u32 [#allocation6], 4
          %s671 = int_to_ptr.vmem [resolvable:$true] %s670
          %673 = dma.vmem_to_hbm [thread:$0]  %s671, 128, %s668, [#allocation7]
        $region56: #{tpu_custom_call.1} parent=31 // pred_fallthru
          _
        // Predicated region
        $region57: #{tpu_custom_call.1} parent=31 // pred_check
          %p674 = pneg %p113
        $region58: #{tpu_custom_call.1} parent=31 // pred_check_branch
          %676 = sbr.rel (%p674) target = $region60
        $region59: #{tpu_custom_call.1} parent=31 // pred_region
          %677 = dma.done [#allocation7], 128
        $region60: #{tpu_custom_call.1} parent=31 // pred_fallthru
          _
      $region32: #{tpu_custom_call.1} parent=5 // pred_fallthru
        _
      %p678 = scmp.le.s32.totalorder 2, %s10
      // Predicated region
      $region61: #{tpu_custom_call.1} parent=5 // pred_check
        %p679 = pneg %p678
      $region62: #{tpu_custom_call.1} parent=5 // pred_check_branch
        %681 = sbr.rel (%p679) target = $region64
      $region63: #{tpu_custom_call.1} parent=5 // pred_region
        %s682 = ssub.s32 %s10, 2
      $region64: #{tpu_custom_call.1} parent=5 // pred_fallthru
        _
    $region6: #{tpu_custom_call.1} parent=1 // loop_footer
      %s14 = sadd.s32 1, %s10
    $region7: #{tpu_custom_call.1} parent=1 // loop_footer_branch
      %9 = sbr.rel target = $region3
    $region8: #{tpu_custom_call.1} parent=1 // loop_exit
      _
    %683 = vsyncpa [#allocation7], 1
    %s684 = scalar_lea.sflag [#allocation7], 1
    %685 = vsyncpa %s684, 1

</llo_original>
